<compile_context>
chip_gen: v5e
topology: v5e:2x2
jax: 0.10.0
libtpu: 0.0.40
codegen_flags: <defaults>
</compile_context>

<pallas_src>
import functools

import jax
import jax.numpy as jnp
from jax import lax
from jax.experimental import pallas as pl
from jax.experimental.pallas import tpu as pltpu

TOKEN_TILE = 128          # kv block size; T is padded to this
NEG_INF = -1e30           # finite "minus infinity" (keeps online softmax NaN-free)


def _pick_tile(dim, candidates=(512, 256, 128)):
    """Largest candidate tile dividing `dim`, else the full dim (always legal)."""
    for c in candidates:
        if dim % c == 0:
            return c
    return dim


def _pick_m_tile(m):
    # 256-row tiles feed the 256-wide MXU on v6e/v7x and halve grid-step overhead;
    # on v5e (128-wide MXU) this only costs a little extra VMEM, which is fine at
    # these block sizes.
    for c in (256, 128):
        if m % c == 0:
            return c
    return m


# ----------------------------- Pallas kernels -----------------------------

def _linear_kernel(x_ref, w_ref, b_ref, o_ref, acc_ref, *, activation):
    # o = x @ w + b  (torch.addmm semantics; weight is [in, out]); optional erf-GELU.
    @pl.when(pl.program_id(2) == 0)
    def _():
        acc_ref[...] = jnp.zeros_like(acc_ref)

    acc_ref[...] += jnp.dot(x_ref[...], w_ref[...],
                            preferred_element_type=jnp.float32)

    @pl.when(pl.program_id(2) == pl.num_programs(2) - 1)
    def _():
        y = acc_ref[...] + b_ref[...].astype(jnp.float32)
        if activation == "gelu":
            y = jax.nn.gelu(y, approximate=False)  # torch F.gelu default (erf)
        o_ref[...] = y.astype(o_ref.dtype)


def _linear_add_ln_kernel(x_ref, w_ref, b_ref, res_ref, g_ref, beta_ref,
                          o_ref, acc_ref, *, eps):
    # o = LayerNorm((x @ w + b) + residual) * g + beta   (FastLayerNorm fused epilogue)
    @pl.when(pl.program_id(1) == 0)
    def _():
        acc_ref[...] = jnp.zeros_like(acc_ref)

    acc_ref[...] += jnp.dot(x_ref[...], w_ref[...],
                            preferred_element_type=jnp.float32)

    @pl.when(pl.program_id(1) == pl.num_programs(1) - 1)
    def _():
        y = (acc_ref[...] + b_ref[...].astype(jnp.float32)
             + res_ref[...].astype(jnp.float32))
        mean = jnp.mean(y, axis=-1, keepdims=True)
        var = jnp.mean(jnp.square(y - mean), axis=-1, keepdims=True)
        y = (y - mean) * lax.rsqrt(var + eps)
        y = y * g_ref[...].astype(jnp.float32) + beta_ref[...].astype(jnp.float32)
        o_ref[...] = y.astype(o_ref.dtype)


def _add_ln_kernel(x_ref, res_ref, g_ref, b_ref, o_ref, *, eps):
    x = x_ref[...].astype(jnp.float32) + res_ref[...].astype(jnp.float32)
    mean = jnp.mean(x, axis=-1, keepdims=True)
    var = jnp.mean(jnp.square(x - mean), axis=-1, keepdims=True)
    y = (x - mean) * lax.rsqrt(var + eps)
    y = y * g_ref[...].astype(jnp.float32) + b_ref[...].astype(jnp.float32)
    o_ref[...] = y.astype(o_ref.dtype)


def _flash_attn_kernel(kstart_smem, kend_smem, segq_ref, segk_ref,
                       q_ref, k_ref, v_ref, o_ref, m_ref, l_ref, acc_ref,
                       *, num_heads, head_dim):
    # q/k/v blocks are lane-dense [tq/tkv, H]; heads sliced inside the kernel.
    # Softmax scale is already folded into the q projection weights.
    qi = pl.program_id(0)
    ki = pl.program_id(1)

    @pl.when(ki == 0)
    def _():
        m_ref[...] = jnp.full_like(m_ref, NEG_INF)
        l_ref[...] = jnp.zeros_like(l_ref)
        acc_ref[...] = jnp.zeros_like(acc_ref)

    # kv block ki is relevant iff it lies in the prefetched per-q-block range.
    overlap = jnp.logical_and(ki >= kstart_smem[qi], ki <= kend_smem[qi])

    @pl.when(overlap)
    def _():
        mask = segq_ref[...] == segk_ref[...]          # (tq, 1)==(1, tkv) -> (tq, tkv)
        for h in range(num_heads):
            sl = slice(h * head_dim, (h + 1) * head_dim)
            # TODO(synk): if Mosaic materializes a per-head k transpose here,
            # feed K pre-transposed [hd, tkv] instead.
            s = lax.dot_general(q_ref[:, sl], k_ref[:, sl],
                                (((1,), (1,)), ((), ())),
                                preferred_element_type=jnp.float32)   # (tq, tkv)
            s = jnp.where(mask, s, NEG_INF)
            m_prev = m_ref[h]                                         # (tq, 1)
            m_next = jnp.maximum(m_prev, jnp.max(s, axis=-1, keepdims=True))
            # No second mask on p: a fully-masked row transiently contributes
            # p == 1 only while m_prev == NEG_INF; the first block with a real
            # match rescales by alpha = exp(NEG_INF - finite) == 0, and a matching
            # (diagonal) block always exists for every row.
            p = jnp.exp(s - m_next)
            alpha = jnp.exp(m_prev - m_next)
            l_ref[h] = alpha * l_ref[h] + jnp.sum(p, axis=-1, keepdims=True)
            pv = lax.dot_general(p.astype(v_ref.dtype), v_ref[:, sl],
                                 (((1,), (0,)), ((), ())),
                                 preferred_element_type=jnp.float32)  # (tq, hd)
            acc_ref[h] = alpha * acc_ref[h] + pv
            m_ref[h] = m_next

    @pl.when(ki == pl.num_programs(1) - 1)
    def _():
        outs = []
        for h in range(num_heads):
            l = l_ref[h]
            l = jnp.where(l == 0.0, 1.0, l)   # guard (padded-only rows never occur)
            outs.append(acc_ref[h] * pl.reciprocal(l, approx=True))
        # Single lane-dense store of the whole (tq, H) tile.
        o_ref[...] = jnp.concatenate(outs, axis=-1).astype(o_ref.dtype)


# ----------------------------- kernel wrappers -----------------------------

def pallas_linear(x, w, b, activation=None):
    M, K = x.shape
    N = w.shape[1]
    tm = _pick_m_tile(M)
    tn = _pick_tile(N)
    tk = _pick_tile(K)
    return pl.pallas_call(
        functools.partial(_linear_kernel, activation=activation),
        out_shape=jax.ShapeDtypeStruct((M, N), x.dtype),
        grid=(M // tm, N // tn, K // tk),
        in_specs=[
            pl.BlockSpec((tm, tk), lambda i, j, k: (i, k)),
            pl.BlockSpec((tk, tn), lambda i, j, k: (k, j)),
            pl.BlockSpec((1, tn), lambda i, j, k: (0, j)),
        ],
        out_specs=pl.BlockSpec((tm, tn), lambda i, j, k: (i, j)),
        scratch_shapes=[pltpu.VMEM((tm, tn), jnp.float32)],
        compiler_params=pltpu.CompilerParams(
            dimension_semantics=("parallel", "parallel", "arbitrary")),
    )(x, w, b.reshape(1, -1))


def pallas_linear_add_ln(x, w, b, residual, gamma, beta, eps):
    # N (= hidden) stays un-tiled so the LayerNorm can run in the matmul epilogue.
    M, K = x.shape
    N = w.shape[1]
    tm = _pick_m_tile(M)
    tk = _pick_tile(K)
    return pl.pallas_call(
        functools.partial(_linear_add_ln_kernel, eps=eps),
        out_shape=jax.ShapeDtypeStruct((M, N), x.dtype),
        grid=(M // tm, K // tk),
        in_specs=[
            pl.BlockSpec((tm, tk), lambda i, k: (i, k)),
            pl.BlockSpec((tk, N), lambda i, k: (k, 0)),
            pl.BlockSpec((1, N), lambda i, k: (0, 0)),
            pl.BlockSpec((tm, N), lambda i, k: (i, 0)),
            pl.BlockSpec((1, N), lambda i, k: (0, 0)),
            pl.BlockSpec((1, N), lambda i, k: (0, 0)),
        ],
        out_specs=pl.BlockSpec((tm, N), lambda i, k: (i, 0)),
        scratch_shapes=[pltpu.VMEM((tm, N), jnp.float32)],
        compiler_params=pltpu.CompilerParams(
            dimension_semantics=("parallel", "arbitrary")),
    )(x, w, b.reshape(1, -1), residual, gamma.reshape(1, -1), beta.reshape(1, -1))


def pallas_add_layernorm(x, residual, gamma, beta, eps):
    M, H = x.shape
    tm = _pick_m_tile(M)
    return pl.pallas_call(
        functools.partial(_add_ln_kernel, eps=eps),
        out_shape=jax.ShapeDtypeStruct((M, H), x.dtype),
        grid=(M // tm,),
        in_specs=[
            pl.BlockSpec((tm, H), lambda i: (i, 0)),
            pl.BlockSpec((tm, H), lambda i: (i, 0)),
            pl.BlockSpec((1, H), lambda i: (0, 0)),
            pl.BlockSpec((1, H), lambda i: (0, 0)),
        ],
        out_specs=pl.BlockSpec((tm, H), lambda i: (i, 0)),
        compiler_params=pltpu.CompilerParams(dimension_semantics=("parallel",)),
    )(x, residual, gamma.reshape(1, -1), beta.reshape(1, -1))


def pallas_flash_attention(qkv, seg, num_heads):
    """Varlen flash attention over the packed [T_pad, 3H] QKV projection output."""
    T_pad, three_h = qkv.shape
    H = three_h // 3
    hd = H // num_heads
    # Larger q blocks amortize the kv stream (kernel is DMA-bound at BERT sizes);
    # kv blocks stay at 128 so the segment block-skip keeps fine granularity.
    tq = 256 if T_pad % 256 == 0 else min(TOKEN_TILE, T_pad)
    tkv = min(TOKEN_TILE, T_pad)
    num_q = T_pad // tq
    num_kv = T_pad // tkv

    seg = seg.astype(jnp.int32)
    seg_col = seg.reshape(T_pad, 1)   # sublane-oriented (q side of the mask)
    seg_row = seg.reshape(1, T_pad)   # lane-oriented   (kv side of the mask)

    # Per-q-block contiguous range [kstart, kend] of overlapping kv blocks
    # (segment ids are non-decreasing over packed tokens).
    qb = jnp.arange(num_q, dtype=jnp.int32)
    kb = jnp.arange(num_kv, dtype=jnp.int32)
    q_lo, q_hi = seg[qb * tq], seg[qb * tq + (tq - 1)]
    k_lo, k_hi = seg[kb * tkv], seg[kb * tkv + (tkv - 1)]
    ov = (q_lo[:, None] <= k_hi[None, :]) & (k_lo[None, :] <= q_hi[:, None])
    kstart = jnp.argmax(ov, axis=1).astype(jnp.int32)
    kend = (num_kv - 1 - jnp.argmax(ov[:, ::-1], axis=1)).astype(jnp.int32)

    # k/v index_maps clamp ki into [kstart, kend]: non-overlapping steps re-return
    # the previous block index, so their kv DMA is skipped entirely; the in-kernel
    # pl.when(overlap) gate skips their compute.
    def kv_map(col):
        def index_map(qi, ki, ks, ke):
            return (jnp.clip(ki, ks[qi], ke[qi]), col)
        return index_map

    if H % 128 == 0:
        # q/k/v column blocks are sliced straight out of packed qkv by the
        # BlockSpecs -- no XLA column-slice HBM round trips.
        q_in, k_in, v_in = qkv, qkv, qkv
        q_spec = pl.BlockSpec((tq, H), lambda qi, ki, ks, ke: (qi, 0))
        k_spec = pl.BlockSpec((tkv, H), kv_map(1))
        v_spec = pl.BlockSpec((tkv, H), kv_map(2))
    else:
        # H not lane-aligned inside the 3H-wide qkv: fall back to XLA slicing.
        q_in = qkv[:, :H]
        k_in = qkv[:, H:2 * H]
        v_in = qkv[:, 2 * H:]
        q_spec = pl.BlockSpec((tq, H), lambda qi, ki, ks, ke: (qi, 0))
        k_spec = pl.BlockSpec((tkv, H), kv_map(0))
        v_spec = pl.BlockSpec((tkv, H), kv_map(0))

    # TODO(synk): pair heads / add a head grid axis for wider p@v tiles and
    # v7x dual-TensorCore sharding; bump k/v to pl.Buffered(3) if DMA stays exposed.
    kernel = functools.partial(_flash_attn_kernel, num_heads=num_heads, head_dim=hd)
    return pl.pallas_call(
        kernel,
        out_shape=jax.ShapeDtypeStruct((T_pad, H), qkv.dtype),
        grid_spec=pltpu.PrefetchScalarGridSpec(
            num_scalar_prefetch=2,                   # per-q-block kv ranges -> SMEM
            grid=(num_q, num_kv),
            in_specs=[
                pl.BlockSpec((tq, 1), lambda qi, ki, ks, ke: (qi, 0)),
                pl.BlockSpec((1, tkv),
                             lambda qi, ki, ks, ke: (0, jnp.clip(ki, ks[qi], ke[qi]))),
                q_spec, k_spec, v_spec,
            ],
            out_specs=pl.BlockSpec((tq, H), lambda qi, ki, ks, ke: (qi, 0)),
            scratch_shapes=[
                pltpu.VMEM((num_heads, tq, 1), jnp.float32),   # running max
                pltpu.VMEM((num_heads, tq, 1), jnp.float32),   # running sum
                pltpu.VMEM((num_heads, tq, hd), jnp.float32),  # output accumulator
            ],
        ),
        compiler_params=pltpu.CompilerParams(
            dimension_semantics=("parallel", "arbitrary")),
    )(kstart, kend, seg_col, seg_row, q_in, k_in, v_in)


# ----------------------------- model (glue + params) -----------------------------

class Config:
    vocab_size = 100
    type_vocab_size = 2
    max_position_embeddings = 32
    hidden_size = 128
    num_attention_heads = 2
    intermediate_size = 256
    num_hidden_layers = 2
    layer_norm_eps = 1e-12


def init_params(key, cfg: Config, dtype=jnp.bfloat16):
    """Params stored in bf16 (the memory-bound linears/attention stream stays bf16);
    the attention softmax scale is folded into the q projection at prep time."""
    H, I = cfg.hidden_size, cfg.intermediate_size
    scale = (H // cfg.num_attention_heads) ** -0.5
    ks = iter(jax.random.split(key, 8 + 10 * cfg.num_hidden_layers))

    def nrm(shape, s=0.02):
        return (s * jax.random.normal(next(ks), shape, dtype=jnp.float32))

    params = {
        "embeddings": {
            "word": nrm((cfg.vocab_size, H)).astype(dtype),
            "token_type": nrm((cfg.type_vocab_size, H)).astype(dtype),
            "position": nrm((cfg.max_position_embeddings, H)).astype(dtype),
            "ln_g": jnp.ones((H,), dtype),
            "ln_b": jnp.zeros((H,), dtype),
        },
        "layers": [],
    }
    for _ in range(cfg.num_hidden_layers):
        qkv_w = nrm((H, 3 * H))                 # [in, out] = cat(q,k,v).T as in lorax
        qkv_b = nrm((3 * H,))
        qkv_w = qkv_w.at[:, :H].multiply(scale)  # fold softmax scale into q proj
        qkv_b = qkv_b.at[:H].multiply(scale)
        params["layers"].append({
            "qkv_w": qkv_w.astype(dtype),
            "qkv_b": qkv_b.astype(dtype),
            "dense_w": nrm((H, H)).astype(dtype),
            "dense_b": nrm((H,)).astype(dtype),
            "attn_ln_g": jnp.ones((H,), dtype),
            "attn_ln_b": jnp.zeros((H,), dtype),
            "inter_w": nrm((H, I)).astype(dtype),
            "inter_b": nrm((I,)).astype(dtype),
            "out_w": nrm((I, H)).astype(dtype),
            "out_b": nrm((H,)).astype(dtype),
            "out_ln_g": jnp.ones((H,), dtype),
            "out_ln_b": jnp.zeros((H,), dtype),
        })
    return params


def _pad_tokens(x, target):
    pad = target - x.shape[0]
    if pad == 0:
        return x
    widths = [(0, pad)] + [(0, 0)] * (x.ndim - 1)
    return jnp.pad(x, widths)


def flash_bert_forward(params, cfg: Config, input_ids, token_type_ids,
                       position_ids, cu_seqlens, max_s):
    nh = cfg.num_attention_heads
    eps = cfg.layer_norm_eps

    T = input_ids.shape[0]
    T_pad = ((T + TOKEN_TILE - 1) // TOKEN_TILE) * TOKEN_TILE

    ids = _pad_tokens(input_ids, T_pad)
    tts = _pad_tokens(token_type_ids, T_pad)
    pos = _pad_tokens(position_ids, T_pad)

    # ---- embeddings: word + token_type, then LN(. + position) ----
    emb = params["embeddings"]
    inputs_embeds = emb["word"][ids] + emb["token_type"][tts]
    position_embeds = emb["position"][pos]
    hidden = pallas_add_layernorm(inputs_embeds, position_embeds,
                                  emb["ln_g"], emb["ln_b"], eps)         # [T_pad, H] bf16

    # ---- per-token segment ids from cu_seqlens (flash-attn-varlen semantics).
    # Padded tokens get segment id == num_seqs, distinct from all real segments,
    # so they only ever attend to each other.
    tok = jnp.arange(T_pad, dtype=jnp.int32)
    seg = (jnp.searchsorted(cu_seqlens.astype(jnp.int32), tok, side="right")
           .astype(jnp.int32) - 1)

    # ---- encoder layers ----
    for lp in params["layers"]:
        # attention block
        residual = hidden
        qkv = pallas_linear(hidden, lp["qkv_w"], lp["qkv_b"])            # [T_pad, 3H]
        attn = pallas_flash_attention(qkv, seg, nh)                      # [T_pad, H]
        hidden = pallas_linear_add_ln(attn, lp["dense_w"], lp["dense_b"],
                                      residual, lp["attn_ln_g"], lp["attn_ln_b"], eps)

        # MLP block
        residual = hidden
        inter = pallas_linear(hidden, lp["inter_w"], lp["inter_b"], activation="gelu")
        hidden = pallas_linear_add_ln(inter, lp["out_w"], lp["out_b"],
                                      residual, lp["out_ln_g"], lp["out_ln_b"], eps)

    # ---- FlashBertModel returns the first token of each sequence ----
    return hidden[cu_seqlens[:-1]]


# ----------------------------- main -----------------------------

if __name__ == "__main__":
    cfg = Config()
    key = jax.random.PRNGKey(0)
    pkey, ikey = jax.random.split(key)

    params = init_params(pkey, cfg)

    # two packed sequences of lengths 5 and 3 -> T = 8 tokens
    lens = [5, 3]
    T = sum(lens)
    cu_seqlens = jnp.array([0, 5, 8], dtype=jnp.int32)
    max_s = max(lens)

    input_ids = jax.random.randint(ikey, (T,), 0, cfg.vocab_size, dtype=jnp.int32)
    token_type_ids = jnp.zeros((T,), dtype=jnp.int32)
    position_ids = jnp.concatenate(
        [jnp.arange(l, dtype=jnp.int32) for l in lens], axis=0)

    out = flash_bert_forward(params, cfg, input_ids, token_type_ids,
                             position_ids, cu_seqlens, max_s)
    out = jax.block_until_ready(out)

    assert out.shape == (len(lens), cfg.hidden_size), out.shape
    assert jnp.all(jnp.isfinite(out.astype(jnp.float32)))
    print("KERNEL_OK")
</pallas_src>

<mosaic_0001>
module attributes {stable_mosaic.version = 11 : i64} {
  func.func @_add_ln_kernel(%arg0: i32, %arg1: memref<128x128xbf16, #tpu.memory_space<vmem>>, %arg2: memref<128x128xbf16, #tpu.memory_space<vmem>>, %arg3: memref<1x128xbf16, #tpu.memory_space<vmem>>, %arg4: memref<1x128xbf16, #tpu.memory_space<vmem>>, %arg5: memref<128x128xbf16, #tpu.memory_space<vmem>>) attributes {dimension_semantics = [#tpu.dimension_semantics<parallel>], iteration_bounds = array<i64: 1>, scalar_prefetch = 0 : i64, scratch_operands = 0 : i64, tpu.core_type = #tpu.core_type<tc>, window_params = [{transform_indices = @transform_0, window_bounds = array<i64: 128, 128>}, {transform_indices = @transform_1, window_bounds = array<i64: 128, 128>}, {pipeline_mode = #tpu.pipeline_mode<synchronous>, transform_indices = @transform_2, window_bounds = array<i64: 1, 128>}, {pipeline_mode = #tpu.pipeline_mode<synchronous>, transform_indices = @transform_3, window_bounds = array<i64: 1, 128>}, {transform_indices = @transform_4, window_bounds = array<i64: 128, 128>}]} {
    %c0 = arith.constant 0 : index
    %c0_0 = arith.constant 0 : index
    %0 = vector.load %arg1[%c0, %c0_0] : memref<128x128xbf16, #tpu.memory_space<vmem>>, vector<128x128xbf16>
    %1 = arith.extf %0 : vector<128x128xbf16> to vector<128x128xf32>
    %c0_1 = arith.constant 0 : index
    %c0_2 = arith.constant 0 : index
    %2 = vector.load %arg2[%c0_1, %c0_2] : memref<128x128xbf16, #tpu.memory_space<vmem>>, vector<128x128xbf16>
    %3 = arith.extf %2 : vector<128x128xbf16> to vector<128x128xf32>
    %4 = arith.addf %1, %3 : vector<128x128xf32>
    %cst = arith.constant dense<0.000000e+00> : vector<128xf32>
    %5 = vector.multi_reduction <add>, %4, %cst [1] : vector<128x128xf32> to vector<128xf32>
    %6 = vector.shape_cast %5 : vector<128xf32> to vector<128x1xf32>
    %cst_3 = arith.constant 1.280000e+02 : f32
    %7 = vector.broadcast %cst_3 : f32 to vector<128x1xf32>
    %8 = arith.divf %6, %7 : vector<128x1xf32>
    %9 = vector.broadcast %8 : vector<128x1xf32> to vector<128x128xf32>
    %10 = arith.subf %4, %9 : vector<128x128xf32>
    %11 = arith.mulf %10, %10 : vector<128x128xf32>
    %cst_4 = arith.constant dense<0.000000e+00> : vector<128xf32>
    %12 = vector.multi_reduction <add>, %11, %cst_4 [1] : vector<128x128xf32> to vector<128xf32>
    %13 = vector.shape_cast %12 : vector<128xf32> to vector<128x1xf32>
    %cst_5 = arith.constant 1.280000e+02 : f32
    %14 = vector.broadcast %cst_5 : f32 to vector<128x1xf32>
    %15 = arith.divf %13, %14 : vector<128x1xf32>
    %16 = vector.broadcast %8 : vector<128x1xf32> to vector<128x128xf32>
    %17 = arith.subf %4, %16 : vector<128x128xf32>
    %cst_6 = arith.constant 9.99999996E-13 : f32
    %18 = vector.broadcast %cst_6 : f32 to vector<128x1xf32>
    %19 = arith.addf %15, %18 : vector<128x1xf32>
    %20 = math.rsqrt %19 : vector<128x1xf32>
    %21 = vector.broadcast %20 : vector<128x1xf32> to vector<128x128xf32>
    %22 = arith.mulf %17, %21 : vector<128x128xf32>
    %c0_7 = arith.constant 0 : index
    %c0_8 = arith.constant 0 : index
    %23 = vector.load %arg3[%c0_7, %c0_8] : memref<1x128xbf16, #tpu.memory_space<vmem>>, vector<1x128xbf16>
    %24 = arith.extf %23 : vector<1x128xbf16> to vector<1x128xf32>
    %25 = vector.broadcast %24 : vector<1x128xf32> to vector<128x128xf32>
    %26 = arith.mulf %22, %25 : vector<128x128xf32>
    %c0_9 = arith.constant 0 : index
    %c0_10 = arith.constant 0 : index
    %27 = vector.load %arg4[%c0_9, %c0_10] : memref<1x128xbf16, #tpu.memory_space<vmem>>, vector<1x128xbf16>
    %28 = arith.extf %27 : vector<1x128xbf16> to vector<1x128xf32>
    %29 = vector.broadcast %28 : vector<1x128xf32> to vector<128x128xf32>
    %30 = arith.addf %26, %29 : vector<128x128xf32>
    %31 = arith.truncf %30 : vector<128x128xf32> to vector<128x128xbf16>
    %c0_11 = arith.constant 0 : index
    %c0_12 = arith.constant 0 : index
    %32 = vector.load %arg5[%c0_11, %c0_12] : memref<128x128xbf16, #tpu.memory_space<vmem>>, vector<128x128xbf16>
    tpu.vector_store %arg5[%c0_11, %c0_12], %31 {strides = array<i32>} : memref<128x128xbf16, #tpu.memory_space<vmem>>, vector<128x128xbf16>,
    return
  }
  func.func @transform_0(%arg0: i32) -> (i32, i32) {
    %c0_i32 = arith.constant 0 : i32
    %c0_i32_0 = arith.constant 0 : i32
    return %arg0, %c0_i32 : i32, i32
  }
  func.func @transform_1(%arg0: i32) -> (i32, i32) {
    %c0_i32 = arith.constant 0 : i32
    %c0_i32_0 = arith.constant 0 : i32
    return %arg0, %c0_i32 : i32, i32
  }
  func.func @transform_2(%arg0: i32) -> (i32, i32) {
    %c0_i32 = arith.constant 0 : i32
    %c0_i32_0 = arith.constant 0 : i32
    %c0_i32_1 = arith.constant 0 : i32
    return %c0_i32, %c0_i32_0 : i32, i32
  }
  func.func @transform_3(%arg0: i32) -> (i32, i32) {
    %c0_i32 = arith.constant 0 : i32
    %c0_i32_0 = arith.constant 0 : i32
    %c0_i32_1 = arith.constant 0 : i32
    return %c0_i32, %c0_i32_0 : i32, i32
  }
  func.func @transform_4(%arg0: i32) -> (i32, i32) {
    %c0_i32 = arith.constant 0 : i32
    %c0_i32_0 = arith.constant 0 : i32
    return %arg0, %c0_i32 : i32, i32
  }
}

</mosaic_0001>

<llo_original>
// kernel: tpu_custom_call.1
$region0: #{tpu_custom_call.1}
  #allocation0 [shape = 'u32[]', space=smem, size = 0x4, offset = 0x4, fixed_abs, tag = 'smem constant byte address 0x4 - core index']
  #allocation1 [shape = 'u32[72,128]{1,0:T(1,128)}', space=vmem, size = 0x9000, scoped, tag = 'internal scratch']
  %s0 = inlined_call_operand.hbm [shape: bf16[128,128], index: 0, kind: input, shape index: {}]
  %s1 = inlined_call_operand.hbm [shape: bf16[128,128], index: 1, kind: input, shape index: {}]
  %s2 = inlined_call_operand.vmem [shape: bf16[1,128], index: 2, kind: input, shape index: {}]
  %s3 = inlined_call_operand.vmem [shape: bf16[1,128], index: 3, kind: input, shape index: {}]
  %s4 = inlined_call_operand.hbm [shape: bf16[128,128], index: 4, kind: output, shape index: {}]
  %s5 = sld [smem:[#allocation0]]
  $region34: #{tpu_custom_call.1} parent=0
    _
  %s7 = ssub.s32 1, %s5
  %s8 = scalar_select 0, %s7, %s5
  $region1: #{tpu_custom_call.1} parent=0
    #allocation2 [shape = 'u8[32768]{0}', space=vmem, size = 0x8000, scoped, tag = 'input window, operand 0, single buffered']
    #allocation3 [shape = 's32[1]{0}', space=sflag, size = 0x4, scoped, tag = 'scoped memory for tpu_custom_call.1']
    #allocation4 [shape = 's32[1]{0}', space=sflag, size = 0x4, scoped, tag = 'scoped memory for tpu_custom_call.1']
    #allocation5 [shape = 'u8[32768]{0}', space=vmem, size = 0x8000, scoped, tag = 'input window, operand 1, single buffered']
    #allocation6 [shape = 's32[1]{0}', space=sflag, size = 0x4, scoped, tag = 'scoped memory for tpu_custom_call.1']
    #allocation7 [shape = 'u8[32768]{0}', space=vmem, size = 0x8000, scoped, tag = 'output window, operand 0, single buffered']
    %9 = vsyncpa [#allocation3], 0
    %10 = vsyncpa [#allocation6], 0
    %11 = vsyncpa [#allocation4], 0
    // Predicated region
    $region2: #{tpu_custom_call.1} parent=1 // pred_check
      _
    $region3: #{tpu_custom_call.1} parent=1 // pred_check_branch
      %13 = sbr.rel (0) target = $region5
    $region4: #{tpu_custom_call.1} parent=1 // pred_region
      %15 = vsyncadd [#allocation3], 0
      %s16 = sshll.u32 %s0, 4
      %s17 = int_to_ptr.hbm [resolvable:$true] %s16
      %s18 = sshll.u32 [#allocation2], 4
      %s19 = int_to_ptr.vmem [resolvable:$true] %s18
      %24 = dma.hbm_to_vmem [thread:$0]  %s17, 1024, %s19, [#allocation3], 64, 64, 4
    $region5: #{tpu_custom_call.1} parent=1 // pred_fallthru
      _
    // Predicated region
    $region6: #{tpu_custom_call.1} parent=1 // pred_check
      _
    $region7: #{tpu_custom_call.1} parent=1 // pred_check_branch
      %26 = sbr.rel (0) target = $region9
    $region8: #{tpu_custom_call.1} parent=1 // pred_region
      %28 = vsyncadd [#allocation6], 0
      %s29 = sshll.u32 %s1, 4
      %s30 = int_to_ptr.hbm [resolvable:$true] %s29
      %s31 = sshll.u32 [#allocation5], 4
      %s32 = int_to_ptr.vmem [resolvable:$true] %s31
      %37 = dma.hbm_to_vmem [thread:$0]  %s30, 1024, %s32, [#allocation6], 64, 64, 4
    $region9: #{tpu_custom_call.1} parent=1 // pred_fallthru
      _
    // Predicated region
    $region10: #{tpu_custom_call.1} parent=1 // pred_check
      _
    $region11: #{tpu_custom_call.1} parent=1 // pred_check_branch
      %39 = sbr.rel (0) target = $region13
    $region12: #{tpu_custom_call.1} parent=1 // pred_region
      _
    $region13: #{tpu_custom_call.1} parent=1 // pred_fallthru
      _
    // Predicated region
    $region14: #{tpu_custom_call.1} parent=1 // pred_check
      _
    $region15: #{tpu_custom_call.1} parent=1 // pred_check_branch
      %41 = sbr.rel (0) target = $region17
    $region16: #{tpu_custom_call.1} parent=1 // pred_region
      _
    $region17: #{tpu_custom_call.1} parent=1 // pred_fallthru
      _
    // Predicated region
    $region18: #{tpu_custom_call.1} parent=1 // pred_check
      _
    $region19: #{tpu_custom_call.1} parent=1 // pred_check_branch
      %43 = sbr.rel (0) target = $region21
    $region20: #{tpu_custom_call.1} parent=1 // pred_region
      %45 = dma.done [#allocation3], 1024
    $region21: #{tpu_custom_call.1} parent=1 // pred_fallthru
      _
    // Predicated region
    $region22: #{tpu_custom_call.1} parent=1 // pred_check
      _
    $region23: #{tpu_custom_call.1} parent=1 // pred_check_branch
      %47 = sbr.rel (0) target = $region25
    $region24: #{tpu_custom_call.1} parent=1 // pred_region
      %49 = dma.done [#allocation6], 1024
    $region25: #{tpu_custom_call.1} parent=1 // pred_fallthru
      _
    %v50 = vld [vmem:[#allocation2] sm:$0xf]
    %v51 = vld [vmem:[#allocation2 + $0x4] sm:$0xf]
    %v52 = vld [vmem:[#allocation2 + $0x8] sm:$0xf]
    %v53 = vld [vmem:[#allocation2 + $0xc] sm:$0xf]
    %v54 = vld [vmem:[#allocation2 + $0x10] sm:$0xf]
    %v55 = vld [vmem:[#allocation2 + $0x14] sm:$0xf]
    %v56 = vld [vmem:[#allocation2 + $0x18] sm:$0xf]
    %v57 = vld [vmem:[#allocation2 + $0x1c] sm:$0xf]
    %v58 = vld [vmem:[#allocation2 + $0x20] sm:$0xf]
    %v59 = vld [vmem:[#allocation2 + $0x24] sm:$0xf]
    %v60 = vld [vmem:[#allocation2 + $0x28] sm:$0xf]
    %v61 = vld [vmem:[#allocation2 + $0x2c] sm:$0xf]
    %v62 = vld [vmem:[#allocation2 + $0x30] sm:$0xf]
    %v63 = vld [vmem:[#allocation2 + $0x34] sm:$0xf]
    %v64 = vld [vmem:[#allocation2 + $0x38] sm:$0xf]
    %v65 = vld [vmem:[#allocation2 + $0x3c] sm:$0xf]
    %v66 = vunpack.c.l.bf16 %v50
    %v67 = vunpack.c.l.bf16 %v51
    %v68 = vunpack.c.l.bf16 %v52
    %v69 = vunpack.c.l.bf16 %v53
    %v70 = vunpack.c.l.bf16 %v54
    %v71 = vunpack.c.l.bf16 %v55
    %v72 = vunpack.c.l.bf16 %v56
    %v73 = vunpack.c.l.bf16 %v57
    %v74 = vunpack.c.l.bf16 %v58
    %v75 = vunpack.c.l.bf16 %v59
    %v76 = vunpack.c.l.bf16 %v60
    %v77 = vunpack.c.l.bf16 %v61
    %v78 = vunpack.c.l.bf16 %v62
    %v79 = vunpack.c.l.bf16 %v63
    %v80 = vunpack.c.l.bf16 %v64
    %v81 = vunpack.c.l.bf16 %v65
    %v82 = vld [vmem:[#allocation5] sm:$0xf]
    %v83 = vld [vmem:[#allocation5 + $0x4] sm:$0xf]
    %v84 = vld [vmem:[#allocation5 + $0x8] sm:$0xf]
    %v85 = vld [vmem:[#allocation5 + $0xc] sm:$0xf]
    %v86 = vld [vmem:[#allocation5 + $0x10] sm:$0xf]
    %v87 = vld [vmem:[#allocation5 + $0x14] sm:$0xf]
    %v88 = vld [vmem:[#allocation5 + $0x18] sm:$0xf]
    %v89 = vld [vmem:[#allocation5 + $0x1c] sm:$0xf]
    %v90 = vld [vmem:[#allocation5 + $0x20] sm:$0xf]
    %v91 = vld [vmem:[#allocation5 + $0x24] sm:$0xf]
    %v92 = vld [vmem:[#allocation5 + $0x28] sm:$0xf]
    %v93 = vld [vmem:[#allocation5 + $0x2c] sm:$0xf]
    %v94 = vld [vmem:[#allocation5 + $0x30] sm:$0xf]
    %v95 = vld [vmem:[#allocation5 + $0x34] sm:$0xf]
    %v96 = vld [vmem:[#allocation5 + $0x38] sm:$0xf]
    %v97 = vld [vmem:[#allocation5 + $0x3c] sm:$0xf]
    %v98 = vunpack.c.l.bf16 %v82
    %v99 = vunpack.c.l.bf16 %v83
    %v100 = vunpack.c.l.bf16 %v84
    %v101 = vunpack.c.l.bf16 %v85
    %v102 = vunpack.c.l.bf16 %v86
    %v103 = vunpack.c.l.bf16 %v87
    %v104 = vunpack.c.l.bf16 %v88
    %v105 = vunpack.c.l.bf16 %v89
    %v106 = vunpack.c.l.bf16 %v90
    %v107 = vunpack.c.l.bf16 %v91
    %v108 = vunpack.c.l.bf16 %v92
    %v109 = vunpack.c.l.bf16 %v93
    %v110 = vunpack.c.l.bf16 %v94
    %v111 = vunpack.c.l.bf16 %v95
    %v112 = vunpack.c.l.bf16 %v96
    %v113 = vunpack.c.l.bf16 %v97
    %v114 = vadd.f32 %v66, %v98
    %v115 = vadd.f32 %v67, %v99
    %v116 = vadd.f32 %v68, %v100
    %v117 = vadd.f32 %v69, %v101
    %v118 = vadd.f32 %v70, %v102
    %v119 = vadd.f32 %v71, %v103
    %v120 = vadd.f32 %v72, %v104
    %v121 = vadd.f32 %v73, %v105
    %v122 = vadd.f32 %v74, %v106
    %v123 = vadd.f32 %v75, %v107
    %v124 = vadd.f32 %v76, %v108
    %v125 = vadd.f32 %v77, %v109
    %v126 = vadd.f32 %v78, %v110
    %v127 = vadd.f32 %v79, %v111
    %v128 = vadd.f32 %v80, %v112
    %v129 = vadd.f32 %v81, %v113
    %130 = vadd.xlane.f32.xlu0 %v114
    %v131 = vpop.xlane.xlu0 %130
    %132 = vadd.xlane.f32.xlu0 %v115
    %v133 = vpop.xlane.xlu0 %132
    %134 = vadd.xlane.f32.xlu0 %v116
    %v135 = vpop.xlane.xlu0 %134
    %136 = vadd.xlane.f32.xlu0 %v117
    %v137 = vpop.xlane.xlu0 %136
    %138 = vadd.xlane.f32.xlu0 %v118
    %v139 = vpop.xlane.xlu0 %138
    %140 = vadd.xlane.f32.xlu0 %v119
    %v141 = vpop.xlane.xlu0 %140
    %142 = vadd.xlane.f32.xlu0 %v120
    %v143 = vpop.xlane.xlu0 %142
    %144 = vadd.xlane.f32.xlu0 %v121
    %v145 = vpop.xlane.xlu0 %144
    %146 = vadd.xlane.f32.xlu0 %v122
    %v147 = vpop.xlane.xlu0 %146
    %148 = vadd.xlane.f32.xlu0 %v123
    %v149 = vpop.xlane.xlu0 %148
    %150 = vadd.xlane.f32.xlu0 %v124
    %v151 = vpop.xlane.xlu0 %150
    %152 = vadd.xlane.f32.xlu0 %v125
    %v153 = vpop.xlane.xlu0 %152
    %154 = vadd.xlane.f32.xlu0 %v126
    %v155 = vpop.xlane.xlu0 %154
    %156 = vadd.xlane.f32.xlu0 %v127
    %v157 = vpop.xlane.xlu0 %156
    %158 = vadd.xlane.f32.xlu0 %v128
    %v159 = vpop.xlane.xlu0 %158
    %160 = vadd.xlane.f32.xlu0 %v129
    %v161 = vpop.xlane.xlu0 %160
    %v162 = vrcp.pop 128.0
    %v163 = vmul.f32 128.0, %v162
    %v164 = vsub.f32 1.0, %v163
    %v165 = vmul.f32 %v162, %v164
    %v166 = vadd.f32 %v162, %v165
    %vm167 = vweird.f32 %v162
    %v168 = vsel %vm167, %v162, %v166
    %v169 = vmul.f32 %v131, %v168
    %v170 = vmul.f32 %v133, %v168
    %v171 = vmul.f32 %v135, %v168
    %v172 = vmul.f32 %v137, %v168
    %v173 = vmul.f32 %v139, %v168
    %v174 = vmul.f32 %v141, %v168
    %v175 = vmul.f32 %v143, %v168
    %v176 = vmul.f32 %v145, %v168
    %v177 = vmul.f32 %v147, %v168
    %v178 = vmul.f32 %v149, %v168
    %v179 = vmul.f32 %v151, %v168
    %v180 = vmul.f32 %v153, %v168
    %v181 = vmul.f32 %v155, %v168
    %v182 = vmul.f32 %v157, %v168
    %v183 = vmul.f32 %v159, %v168
    %v184 = vmul.f32 %v161, %v168
    %v185 = vsub.f32 %v114, %v169
    %v186 = vsub.f32 %v115, %v170
    %v187 = vsub.f32 %v116, %v171
    %v188 = vsub.f32 %v117, %v172
    %v189 = vsub.f32 %v118, %v173
    %v190 = vsub.f32 %v119, %v174
    %v191 = vsub.f32 %v120, %v175
    %v192 = vsub.f32 %v121, %v176
    %v193 = vsub.f32 %v122, %v177
    %v194 = vsub.f32 %v123, %v178
    %v195 = vsub.f32 %v124, %v179
    %v196 = vsub.f32 %v125, %v180
    %v197 = vsub.f32 %v126, %v181
    %v198 = vsub.f32 %v127, %v182
    %v199 = vsub.f32 %v128, %v183
    %v200 = vsub.f32 %v129, %v184
    %v201 = vmul.f32 %v185, %v185
    %v202 = vmul.f32 %v186, %v186
    %v203 = vmul.f32 %v187, %v187
    %v204 = vmul.f32 %v188, %v188
    %v205 = vmul.f32 %v189, %v189
    %v206 = vmul.f32 %v190, %v190
    %v207 = vmul.f32 %v191, %v191
    %v208 = vmul.f32 %v192, %v192
    %v209 = vmul.f32 %v193, %v193
    %v210 = vmul.f32 %v194, %v194
    %v211 = vmul.f32 %v195, %v195
    %v212 = vmul.f32 %v196, %v196
    %v213 = vmul.f32 %v197, %v197
    %v214 = vmul.f32 %v198, %v198
    %v215 = vmul.f32 %v199, %v199
    %v216 = vmul.f32 %v200, %v200
    %217 = vadd.xlane.f32.xlu0 %v201
    %v218 = vpop.xlane.xlu0 %217
    %219 = vadd.xlane.f32.xlu0 %v202
    %v220 = vpop.xlane.xlu0 %219
    %221 = vadd.xlane.f32.xlu0 %v203
    %v222 = vpop.xlane.xlu0 %221
    %223 = vadd.xlane.f32.xlu0 %v204
    %v224 = vpop.xlane.xlu0 %223
    %225 = vadd.xlane.f32.xlu0 %v205
    %v226 = vpop.xlane.xlu0 %225
    %227 = vadd.xlane.f32.xlu0 %v206
    %v228 = vpop.xlane.xlu0 %227
    %229 = vadd.xlane.f32.xlu0 %v207
    %v230 = vpop.xlane.xlu0 %229
    %231 = vadd.xlane.f32.xlu0 %v208
    %v232 = vpop.xlane.xlu0 %231
    %233 = vadd.xlane.f32.xlu0 %v209
    %v234 = vpop.xlane.xlu0 %233
    %235 = vadd.xlane.f32.xlu0 %v210
    %v236 = vpop.xlane.xlu0 %235
    %237 = vadd.xlane.f32.xlu0 %v211
    %v238 = vpop.xlane.xlu0 %237
    %239 = vadd.xlane.f32.xlu0 %v212
    %v240 = vpop.xlane.xlu0 %239
    %241 = vadd.xlane.f32.xlu0 %v213
    %v242 = vpop.xlane.xlu0 %241
    %243 = vadd.xlane.f32.xlu0 %v214
    %v244 = vpop.xlane.xlu0 %243
    %245 = vadd.xlane.f32.xlu0 %v215
    %v246 = vpop.xlane.xlu0 %245
    %247 = vadd.xlane.f32.xlu0 %v216
    %v248 = vpop.xlane.xlu0 %247
    %v249 = vmul.f32 %v218, %v168
    %v250 = vmul.f32 %v220, %v168
    %v251 = vmul.f32 %v222, %v168
    %v252 = vmul.f32 %v224, %v168
    %v253 = vmul.f32 %v226, %v168
    %v254 = vmul.f32 %v228, %v168
    %v255 = vmul.f32 %v230, %v168
    %v256 = vmul.f32 %v232, %v168
    %v257 = vmul.f32 %v234, %v168
    %v258 = vmul.f32 %v236, %v168
    %v259 = vmul.f32 %v238, %v168
    %v260 = vmul.f32 %v240, %v168
    %v261 = vmul.f32 %v242, %v168
    %v262 = vmul.f32 %v244, %v168
    %v263 = vmul.f32 %v246, %v168
    %v264 = vmul.f32 %v248, %v168
    %v265 = vadd.f32 %v249, 1e-12
    %v266 = vadd.f32 %v250, 1e-12
    %v267 = vadd.f32 %v251, 1e-12
    %v268 = vadd.f32 %v252, 1e-12
    %v269 = vadd.f32 %v253, 1e-12
    %v270 = vadd.f32 %v254, 1e-12
    %v271 = vadd.f32 %v255, 1e-12
    %v272 = vadd.f32 %v256, 1e-12
    %v273 = vadd.f32 %v257, 1e-12
    %v274 = vadd.f32 %v258, 1e-12
    %v275 = vadd.f32 %v259, 1e-12
    %v276 = vadd.f32 %v260, 1e-12
    %v277 = vadd.f32 %v261, 1e-12
    %v278 = vadd.f32 %v262, 1e-12
    %v279 = vadd.f32 %v263, 1e-12
    %v280 = vadd.f32 %v264, 1e-12
    %v281 = vrsqrt.pop %v265
    %v282 = vmul.f32 %v281, %v265
    %v283 = vmul.f32 %v282, %v281
    %v284 = vmul.f32 0.5, %v283
    %v285 = vsub.f32 1.5, %v284
    %v286 = vmul.f32 %v281, %v285
    %vm287 = vweird.f32 %v265
    %vm288 = vweird.f32 %v281
    %vm289 = vmor %vm287, %vm288
    %v290 = vsel %vm289, %v281, %v286
    %v291 = vrsqrt.pop %v266
    %v292 = vmul.f32 %v291, %v266
    %v293 = vmul.f32 %v292, %v291
    %v294 = vmul.f32 0.5, %v293
    %v295 = vsub.f32 1.5, %v294
    %v296 = vmul.f32 %v291, %v295
    %vm297 = vweird.f32 %v266
    %vm298 = vweird.f32 %v291
    %vm299 = vmor %vm297, %vm298
    %v300 = vsel %vm299, %v291, %v296
    %v301 = vrsqrt.pop %v267
    %v302 = vmul.f32 %v301, %v267
    %v303 = vmul.f32 %v302, %v301
    %v304 = vmul.f32 0.5, %v303
    %v305 = vsub.f32 1.5, %v304
    %v306 = vmul.f32 %v301, %v305
    %vm307 = vweird.f32 %v267
    %vm308 = vweird.f32 %v301
    %vm309 = vmor %vm307, %vm308
    %v310 = vsel %vm309, %v301, %v306
    %v311 = vrsqrt.pop %v268
    %v312 = vmul.f32 %v311, %v268
    %v313 = vmul.f32 %v312, %v311
    %v314 = vmul.f32 0.5, %v313
    %v315 = vsub.f32 1.5, %v314
    %v316 = vmul.f32 %v311, %v315
    %vm317 = vweird.f32 %v268
    %vm318 = vweird.f32 %v311
    %vm319 = vmor %vm317, %vm318
    %v320 = vsel %vm319, %v311, %v316
    %v321 = vrsqrt.pop %v269
    %v322 = vmul.f32 %v321, %v269
    %v323 = vmul.f32 %v322, %v321
    %v324 = vmul.f32 0.5, %v323
    %v325 = vsub.f32 1.5, %v324
    %v326 = vmul.f32 %v321, %v325
    %vm327 = vweird.f32 %v269
    %vm328 = vweird.f32 %v321
    %vm329 = vmor %vm327, %vm328
    %v330 = vsel %vm329, %v321, %v326
    %v331 = vrsqrt.pop %v270
    %v332 = vmul.f32 %v331, %v270
    %v333 = vmul.f32 %v332, %v331
    %v334 = vmul.f32 0.5, %v333
    %v335 = vsub.f32 1.5, %v334
    %v336 = vmul.f32 %v331, %v335
    %vm337 = vweird.f32 %v270
    %vm338 = vweird.f32 %v331
    %vm339 = vmor %vm337, %vm338
    %v340 = vsel %vm339, %v331, %v336
    %v341 = vrsqrt.pop %v271
    %v342 = vmul.f32 %v341, %v271
    %v343 = vmul.f32 %v342, %v341
    %v344 = vmul.f32 0.5, %v343
    %v345 = vsub.f32 1.5, %v344
    %v346 = vmul.f32 %v341, %v345
    %vm347 = vweird.f32 %v271
    %vm348 = vweird.f32 %v341
    %vm349 = vmor %vm347, %vm348
    %v350 = vsel %vm349, %v341, %v346
    %v351 = vrsqrt.pop %v272
    %v352 = vmul.f32 %v351, %v272
    %v353 = vmul.f32 %v352, %v351
    %v354 = vmul.f32 0.5, %v353
    %v355 = vsub.f32 1.5, %v354
    %v356 = vmul.f32 %v351, %v355
    %vm357 = vweird.f32 %v272
    %vm358 = vweird.f32 %v351
    %vm359 = vmor %vm357, %vm358
    %v360 = vsel %vm359, %v351, %v356
    %v361 = vrsqrt.pop %v273
    %v362 = vmul.f32 %v361, %v273
    %v363 = vmul.f32 %v362, %v361
    %v364 = vmul.f32 0.5, %v363
    %v365 = vsub.f32 1.5, %v364
    %v366 = vmul.f32 %v361, %v365
    %vm367 = vweird.f32 %v273
    %vm368 = vweird.f32 %v361
    %vm369 = vmor %vm367, %vm368
    %v370 = vsel %vm369, %v361, %v366
    %v371 = vrsqrt.pop %v274
    %v372 = vmul.f32 %v371, %v274
    %v373 = vmul.f32 %v372, %v371
    %v374 = vmul.f32 0.5, %v373
    %v375 = vsub.f32 1.5, %v374
    %v376 = vmul.f32 %v371, %v375
    %vm377 = vweird.f32 %v274
    %vm378 = vweird.f32 %v371
    %vm379 = vmor %vm377, %vm378
    %v380 = vsel %vm379, %v371, %v376
    %v381 = vrsqrt.pop %v275
    %v382 = vmul.f32 %v381, %v275
    %v383 = vmul.f32 %v382, %v381
    %v384 = vmul.f32 0.5, %v383
    %v385 = vsub.f32 1.5, %v384
    %v386 = vmul.f32 %v381, %v385
    %vm387 = vweird.f32 %v275
    %vm388 = vweird.f32 %v381
    %vm389 = vmor %vm387, %vm388
    %v390 = vsel %vm389, %v381, %v386
    %v391 = vrsqrt.pop %v276
    %v392 = vmul.f32 %v391, %v276
    %v393 = vmul.f32 %v392, %v391
    %v394 = vmul.f32 0.5, %v393
    %v395 = vsub.f32 1.5, %v394
    %v396 = vmul.f32 %v391, %v395
    %vm397 = vweird.f32 %v276
    %vm398 = vweird.f32 %v391
    %vm399 = vmor %vm397, %vm398
    %v400 = vsel %vm399, %v391, %v396
    %v401 = vrsqrt.pop %v277
    %v402 = vmul.f32 %v401, %v277
    %v403 = vmul.f32 %v402, %v401
    %v404 = vmul.f32 0.5, %v403
    %v405 = vsub.f32 1.5, %v404
    %v406 = vmul.f32 %v401, %v405
    %vm407 = vweird.f32 %v277
    %vm408 = vweird.f32 %v401
    %vm409 = vmor %vm407, %vm408
    %v410 = vsel %vm409, %v401, %v406
    %v411 = vrsqrt.pop %v278
    %v412 = vmul.f32 %v411, %v278
    %v413 = vmul.f32 %v412, %v411
    %v414 = vmul.f32 0.5, %v413
    %v415 = vsub.f32 1.5, %v414
    %v416 = vmul.f32 %v411, %v415
    %vm417 = vweird.f32 %v278
    %vm418 = vweird.f32 %v411
    %vm419 = vmor %vm417, %vm418
    %v420 = vsel %vm419, %v411, %v416
    %v421 = vrsqrt.pop %v279
    %v422 = vmul.f32 %v421, %v279
    %v423 = vmul.f32 %v422, %v421
    %v424 = vmul.f32 0.5, %v423
    %v425 = vsub.f32 1.5, %v424
    %v426 = vmul.f32 %v421, %v425
    %vm427 = vweird.f32 %v279
    %vm428 = vweird.f32 %v421
    %vm429 = vmor %vm427, %vm428
    %v430 = vsel %vm429, %v421, %v426
    %v431 = vrsqrt.pop %v280
    %v432 = vmul.f32 %v431, %v280
    %v433 = vmul.f32 %v432, %v431
    %v434 = vmul.f32 0.5, %v433
    %v435 = vsub.f32 1.5, %v434
    %v436 = vmul.f32 %v431, %v435
    %vm437 = vweird.f32 %v280
    %vm438 = vweird.f32 %v431
    %vm439 = vmor %vm437, %vm438
    %v440 = vsel %vm439, %v431, %v436
    %v441 = vmul.f32 %v185, %v290
    %v442 = vmul.f32 %v186, %v300
    %v443 = vmul.f32 %v187, %v310
    %v444 = vmul.f32 %v188, %v320
    %v445 = vmul.f32 %v189, %v330
    %v446 = vmul.f32 %v190, %v340
    %v447 = vmul.f32 %v191, %v350
    %v448 = vmul.f32 %v192, %v360
    %v449 = vmul.f32 %v193, %v370
    %v450 = vmul.f32 %v194, %v380
    %v451 = vmul.f32 %v195, %v390
    %v452 = vmul.f32 %v196, %v400
    %v453 = vmul.f32 %v197, %v410
    %v454 = vmul.f32 %v198, %v420
    %v455 = vmul.f32 %v199, %v430
    %v456 = vmul.f32 %v200, %v440
    %v457 = vld [vmem:[%s2] sm:$0x1]
    %v458 = vunpack.c.l.bf16 %v457
    %v459 = vperm.slane %v458, 0
    %v460 = vmul.f32 %v441, %v459
    %v461 = vmul.f32 %v442, %v459
    %v462 = vmul.f32 %v443, %v459
    %v463 = vmul.f32 %v444, %v459
    %v464 = vmul.f32 %v445, %v459
    %v465 = vmul.f32 %v446, %v459
    %v466 = vmul.f32 %v447, %v459
    %v467 = vmul.f32 %v448, %v459
    %v468 = vmul.f32 %v449, %v459
    %v469 = vmul.f32 %v450, %v459
    %v470 = vmul.f32 %v451, %v459
    %v471 = vmul.f32 %v452, %v459
    %v472 = vmul.f32 %v453, %v459
    %v473 = vmul.f32 %v454, %v459
    %v474 = vmul.f32 %v455, %v459
    %v475 = vmul.f32 %v456, %v459
    %v476 = vld [vmem:[%s3] sm:$0x1]
    %v477 = vunpack.c.l.bf16 %v476
    %v478 = vperm.slane %v477, 0
    %v479 = vadd.f32 %v460, %v478
    %v480 = vadd.f32 %v461, %v478
    %v481 = vadd.f32 %v462, %v478
    %v482 = vadd.f32 %v463, %v478
    %v483 = vadd.f32 %v464, %v478
    %v484 = vadd.f32 %v465, %v478
    %v485 = vadd.f32 %v466, %v478
    %v486 = vadd.f32 %v467, %v478
    %v487 = vadd.f32 %v468, %v478
    %v488 = vadd.f32 %v469, %v478
    %v489 = vadd.f32 %v470, %v478
    %v490 = vadd.f32 %v471, %v478
    %v491 = vadd.f32 %v472, %v478
    %v492 = vadd.f32 %v473, %v478
    %v493 = vadd.f32 %v474, %v478
    %v494 = vadd.f32 %v475, %v478
    %v495 = vpack.c.bf16 %v479, %v479
    %v496 = vpack.c.bf16 %v480, %v480
    %v497 = vpack.c.bf16 %v481, %v481
    %v498 = vpack.c.bf16 %v482, %v482
    %v499 = vpack.c.bf16 %v483, %v483
    %v500 = vpack.c.bf16 %v484, %v484
    %v501 = vpack.c.bf16 %v485, %v485
    %v502 = vpack.c.bf16 %v486, %v486
    %v503 = vpack.c.bf16 %v487, %v487
    %v504 = vpack.c.bf16 %v488, %v488
    %v505 = vpack.c.bf16 %v489, %v489
    %v506 = vpack.c.bf16 %v490, %v490
    %v507 = vpack.c.bf16 %v491, %v491
    %v508 = vpack.c.bf16 %v492, %v492
    %v509 = vpack.c.bf16 %v493, %v493
    %v510 = vpack.c.bf16 %v494, %v494
    %511 = vst [vmem:[#allocation7] sm:$0xf] %v495
    %512 = vst [vmem:[#allocation7 + $0x4] sm:$0xf] %v496
    %513 = vst [vmem:[#allocation7 + $0x8] sm:$0xf] %v497
    %514 = vst [vmem:[#allocation7 + $0xc] sm:$0xf] %v498
    %515 = vst [vmem:[#allocation7 + $0x10] sm:$0xf] %v499
    %516 = vst [vmem:[#allocation7 + $0x14] sm:$0xf] %v500
    %517 = vst [vmem:[#allocation7 + $0x18] sm:$0xf] %v501
    %518 = vst [vmem:[#allocation7 + $0x1c] sm:$0xf] %v502
    %519 = vst [vmem:[#allocation7 + $0x20] sm:$0xf] %v503
    %520 = vst [vmem:[#allocation7 + $0x24] sm:$0xf] %v504
    %521 = vst [vmem:[#allocation7 + $0x28] sm:$0xf] %v505
    %522 = vst [vmem:[#allocation7 + $0x2c] sm:$0xf] %v506
    %523 = vst [vmem:[#allocation7 + $0x30] sm:$0xf] %v507
    %524 = vst [vmem:[#allocation7 + $0x34] sm:$0xf] %v508
    %525 = vst [vmem:[#allocation7 + $0x38] sm:$0xf] %v509
    %526 = vst [vmem:[#allocation7 + $0x3c] sm:$0xf] %v510
    // Predicated region
    $region26: #{tpu_custom_call.1} parent=1 // pred_check
      _
    $region27: #{tpu_custom_call.1} parent=1 // pred_check_branch
      %528 = sbr.rel (0) target = $region29
    $region28: #{tpu_custom_call.1} parent=1 // pred_region
      %530 = vsyncadd [#allocation4], 0
      %s531 = sshll.u32 [#allocation7], 4
      %s532 = int_to_ptr.vmem [resolvable:$true] %s531
      %s533 = sshll.u32 %s4, 4
      %s534 = int_to_ptr.hbm [resolvable:$true] %s533
      %539 = dma.vmem_to_hbm [thread:$0]  %s532, 1024, %s534, [#allocation4], 64, 64, 4
    $region29: #{tpu_custom_call.1} parent=1 // pred_fallthru
      _
    // Predicated region
    $region30: #{tpu_custom_call.1} parent=1 // pred_check
      _
    $region31: #{tpu_custom_call.1} parent=1 // pred_check_branch
      %541 = sbr.rel (0) target = $region33
    $region32: #{tpu_custom_call.1} parent=1 // pred_region
      %543 = dma.done [#allocation4], 1024
    $region33: #{tpu_custom_call.1} parent=1 // pred_fallthru
      _
    %544 = vsyncpa [#allocation3], 1
    %545 = vsyncpa [#allocation6], 1
    %546 = vsyncpa [#allocation4], 1

</llo_original>
